<compile_context>
chip_gen: v7x
topology: tpu7x:2x2x1
jax: 0.10.0
libtpu: 0.0.40
codegen_flags: <defaults>
</compile_context>

<pallas_src>
import functools

import jax
import jax.numpy as jnp
from jax.experimental import pallas as pl
from jax.experimental.pallas import tpu as pltpu


def _cdiv(a, b):
    return -(-a // b)


def _round_up(x, m):
    return _cdiv(x, m) * m


_PER_BUFFER_BYTES = 8 * 1024 * 1024  # per pipeline buffer (double-buffered -> ~16 MiB)


# ---------------------------------------------------------------------------
# Kernels
# ---------------------------------------------------------------------------

def _ls_wide_kernel(pred_ref, tgt_ref, out_ref, *, steps, true_b,
                    confidence, smooth_val):
    """Batch on sublanes, classes on lanes. pred block [TB, C], tgt block [TB, 1]."""
    p = pl.program_id(0)   # megacore split ("parallel")
    i = pl.program_id(1)   # this core's batch tiles ("arbitrary" reduction)

    @pl.when(i == 0)
    def _():
        out_ref[...] = jnp.zeros_like(out_ref)

    logits = pred_ref[...].astype(jnp.float32)                    # upcast in VMEM
    tb, c = logits.shape

    # log-sum-exp pieces (per row).
    m = jnp.max(logits, axis=-1, keepdims=True)                   # [TB, 1]
    lse = jnp.log(jnp.sum(jnp.exp(logits - m), axis=-1, keepdims=True))

    # sum_c(true_dist*logits) = smooth*sum_c(logits) + (conf - smooth)*logits[target]
    sum_logits = jnp.sum(logits, axis=-1, keepdims=True)
    class_ids = jax.lax.broadcasted_iota(jnp.int32, (tb, c), 1)
    tgt_logits = jnp.sum(jnp.where(class_ids == tgt_ref[...], logits, 0.0),
                         axis=-1, keepdims=True)

    # loss_row = -sum_c(true_dist*logp), logp = logits - m - lse, sum_c(true_dist)==1
    per_row = (m + lse) - (smooth_val * sum_logits
                           + (confidence - smooth_val) * tgt_logits)

    # Mask rows past the true batch (ragged last tile / clamped duplicate tile).
    g = p * steps + i
    row_ids = g * tb + jax.lax.broadcasted_iota(jnp.int32, (tb, 1), 0)
    per_row = jnp.where(row_ids < true_b, per_row, 0.0)

    out_ref[...] += jnp.sum(per_row)           # scalar broadcast into (1, 8, 128)


def _ls_tall_kernel(pred_ref, tgt_ref, out_ref, *, steps, true_b,
                    confidence, smooth_val):
    """Tiny-C layout: classes on sublanes, batch on lanes. pred block [C, TBL]."""
    p = pl.program_id(0)
    i = pl.program_id(1)

    @pl.when(i == 0)
    def _():
        out_ref[...] = jnp.zeros_like(out_ref)

    logits = pred_ref[...].astype(jnp.float32)                    # [C, TBL]
    c, tbl = logits.shape

    m = jnp.max(logits, axis=0, keepdims=True)                    # [1, TBL]
    lse = jnp.log(jnp.sum(jnp.exp(logits - m), axis=0, keepdims=True))

    sum_logits = jnp.sum(logits, axis=0, keepdims=True)
    class_ids = jax.lax.broadcasted_iota(jnp.int32, (c, tbl), 0)
    tgt_logits = jnp.sum(jnp.where(class_ids == tgt_ref[...], logits, 0.0),
                         axis=0, keepdims=True)

    per_col = (m + lse) - (smooth_val * sum_logits
                           + (confidence - smooth_val) * tgt_logits)

    g = p * steps + i
    col_ids = g * tbl + jax.lax.broadcasted_iota(jnp.int32, (1, tbl), 1)
    per_col = jnp.where(col_ids < true_b, per_col, 0.0)

    out_ref[...] += jnp.sum(per_col)


# ---------------------------------------------------------------------------
# Wrappers
# ---------------------------------------------------------------------------

def _accumulate(kernel, num_cores, steps, in_specs, pred_arr, tgt_arr):
    """Run the 2-D (cores, tiles) grid; return sum of the per-core partial sums."""
    out = pl.pallas_call(
        kernel,
        out_shape=jax.ShapeDtypeStruct((num_cores, 8, 128), jnp.float32),
        grid=(num_cores, steps),
        in_specs=in_specs,
        # Each core owns its own (1, 8, 128) output block and accumulates into it
        # across the "arbitrary" tile axis (block stays VMEM-resident).
        out_specs=pl.BlockSpec((1, 8, 128), lambda p, i: (p, 0, 0)),
        compiler_params=pltpu.CompilerParams(
            dimension_semantics=("parallel", "arbitrary"),
            vmem_limit_bytes=32 * 1024 * 1024,
        ),
    )(pred_arr, tgt_arr)
    return jnp.sum(out[:, 0, 0])


def _loss_wide(pred, target, smoothing, block_rows):
    b, c = pred.shape
    confidence = 1.0 - smoothing
    smooth_val = smoothing / (c - 1)
    itemsize = pred.dtype.itemsize

    if block_rows is None:
        # Only pred (+ its lane-padded int32 target column) is double-buffered;
        # size the tile by a per-buffer byte budget (no fixed row cap).
        bytes_per_row = _round_up(c, 128) * itemsize + 128 * 4
        block_rows = _PER_BUFFER_BYTES // bytes_per_row
    tb = max(8, min((block_rows // 8) * 8, _round_up(b, 8)))

    n_tiles = _cdiv(b, tb)
    num_cores = 2 if n_tiles >= 2 else 1      # v7x megacore split; no-op on v5e/v6e
    steps = _cdiv(n_tiles, num_cores)

    # Only the tiny int32 target is padded; pred is neither padded nor cast.
    target2d = jnp.pad(target, (0, n_tiles * tb - b)).reshape(n_tiles * tb, 1)

    def tile_map(p, i):
        # Clamp so an odd tile count never produces a fully out-of-bounds block;
        # the duplicate tile is fully masked inside the kernel.
        return (jnp.minimum(p * steps + i, n_tiles - 1), 0)

    kernel = functools.partial(_ls_wide_kernel, steps=steps, true_b=b,
                               confidence=confidence, smooth_val=smooth_val)
    in_specs = [pl.BlockSpec((tb, c), tile_map),
                pl.BlockSpec((tb, 1), tile_map)]
    return _accumulate(kernel, num_cores, steps, in_specs, pred, target2d) / b


def _loss_tall(pred, target, smoothing, block_cols):
    b, c = pred.shape
    confidence = 1.0 - smoothing
    smooth_val = smoothing / (c - 1)
    itemsize = pred.dtype.itemsize

    if block_cols is None:
        sub = 32 // itemsize                  # sublane packing: f32->8, bf16->16
        bytes_per_col = _round_up(c, sub) * itemsize + 8 * 4
        block_cols = _PER_BUFFER_BYTES // bytes_per_col
    tbl = max(128, min((block_cols // 128) * 128, _round_up(b, 128)))

    n_tiles = _cdiv(b, tbl)
    num_cores = 2 if n_tiles >= 2 else 1
    steps = _cdiv(n_tiles, num_cores)

    pred_t = pred.T                           # [C, B]; tiny-C regime only
    target_row = jnp.pad(target, (0, n_tiles * tbl - b)).reshape(1, n_tiles * tbl)

    def tile_map(p, i):
        return (0, jnp.minimum(p * steps + i, n_tiles - 1))

    kernel = functools.partial(_ls_tall_kernel, steps=steps, true_b=b,
                               confidence=confidence, smooth_val=smooth_val)
    in_specs = [pl.BlockSpec((c, tbl), tile_map),
                pl.BlockSpec((1, tbl), tile_map)]
    return _accumulate(kernel, num_cores, steps, in_specs, pred_t, target_row) / b


def label_smoothing_loss(pred, target, *, smoothing=0.05, block=None):
    """pred: [B, C] float logits (f32 or bf16); target: [B] int class ids -> scalar f32.

    Note: like the PyTorch module, C == 1 is degenerate (smoothing / (C-1)).
    """
    _, c = pred.shape
    target = target.astype(jnp.int32)
    if 3 * c >= 128:
        # Classes on lanes (lane-dense for C >~ 43; lane-padded below 128).
        return _loss_wide(pred, target, smoothing, block)
    # Tiny C: batch on the lane axis to avoid ~C/128 lane utilization.
    return _loss_tall(pred, target, smoothing, block)


def label_smoothing_loss_ref(pred, target, *, smoothing=0.05):
    b, c = pred.shape
    confidence = 1.0 - smoothing
    logp = jax.nn.log_softmax(pred.astype(jnp.float32), axis=-1)
    true_dist = jnp.full_like(logp, smoothing / (c - 1))
    true_dist = true_dist.at[jnp.arange(b), target].set(confidence)
    return jnp.mean(jnp.sum(-true_dist * logp, axis=-1))


if __name__ == "__main__":
    key = jax.random.PRNGKey(0)
    k1, k2, k3, k4 = jax.random.split(key, 4)

    # Case 1: module defaults (config.num_classes = 3, smoothing = 0.05)
    # -> tiny-C path: batch on lanes, single tile.
    B1, C1 = 10, 3
    pred1 = jax.random.normal(k1, (B1, C1), dtype=jnp.float32)
    tgt1 = jax.random.randint(k2, (B1,), 0, C1, dtype=jnp.int32)
    loss1 = jax.block_until_ready(label_smoothing_loss(pred1, tgt1, smoothing=0.05))
    ref1 = label_smoothing_loss_ref(pred1, tgt1, smoothing=0.05)
    assert jnp.allclose(loss1, ref1, rtol=1e-5, atol=1e-5), (loss1, ref1)

    # Case 2: wide-C path with bf16 logits kept bf16 on the HBM side, a ragged
    # last tile (37 % 16 != 0) and an odd tile count exercising the clamped
    # megacore split + init/accumulate path.
    B2, C2 = 37, 160
    pred2 = jax.random.normal(k3, (B2, C2), dtype=jnp.float32).astype(jnp.bfloat16)
    tgt2 = jax.random.randint(k4, (B2,), 0, C2, dtype=jnp.int32)
    loss2 = jax.block_until_ready(
        label_smoothing_loss(pred2, tgt2, smoothing=0.05, block=16))
    ref2 = label_smoothing_loss_ref(pred2.astype(jnp.float32), tgt2, smoothing=0.05)
    assert jnp.allclose(loss2, ref2, rtol=1e-4, atol=1e-4), (loss2, ref2)

    print("KERNEL_OK")
</pallas_src>

<mosaic_0001>
module attributes {stable_mosaic.version = 11 : i64} {
  func.func @_ls_tall_kernel(%arg0: i32, %arg1: i32, %arg2: memref<3x128xf32, #tpu.memory_space<vmem>>, %arg3: memref<1x128xi32, #tpu.memory_space<vmem>>, %arg4: memref<1x8x128xf32, #tpu.memory_space<vmem>>) attributes {dimension_semantics = [#tpu.dimension_semantics<parallel>, #tpu.dimension_semantics<arbitrary>], iteration_bounds = array<i64: 1, 1>, scalar_prefetch = 0 : i64, scratch_operands = 0 : i64, tpu.core_type = #tpu.core_type<tc>, window_params = [{transform_indices = @transform_0, window_bounds = array<i64: 3, 128>}, {transform_indices = @transform_1, window_bounds = array<i64: 1, 128>}, {transform_indices = @transform_2, window_bounds = array<i64: 1, 8, 128>}]} {
    %c0_i32 = arith.constant 0 : i32
    %0 = arith.cmpi eq, %arg1, %c0_i32 : i32
    %1 = arith.extui %0 : i1 to i32
    %c0_i32_0 = arith.constant 0 : i32
    %2 = arith.cmpi ne, %1, %c0_i32_0 : i32
    scf.if %2 {
      %cst_18 = arith.constant 0.000000e+00 : f32
      %47 = vector.broadcast %cst_18 : f32 to vector<1x8x128xf32>
      %c0_19 = arith.constant 0 : index
      %c0_20 = arith.constant 0 : index
      %c0_21 = arith.constant 0 : index
      %48 = vector.load %arg4[%c0_19, %c0_20, %c0_21] : memref<1x8x128xf32, #tpu.memory_space<vmem>>, vector<1x8x128xf32>
      tpu.vector_store %arg4[%c0_19, %c0_20, %c0_21], %47 {strides = array<i32>} : memref<1x8x128xf32, #tpu.memory_space<vmem>>, vector<1x8x128xf32>,
    } else {
    }
    %c0 = arith.constant 0 : index
    %c0_1 = arith.constant 0 : index
    %3 = vector.load %arg2[%c0, %c0_1] : memref<3x128xf32, #tpu.memory_space<vmem>>, vector<3x128xf32>
    %cst = arith.constant dense<0xFF800000> : vector<128xf32>
    %4 = vector.multi_reduction <maximumf>, %3, %cst [0] : vector<3x128xf32> to vector<128xf32>
    %5 = vector.shape_cast %4 : vector<128xf32> to vector<1x128xf32>
    %6 = vector.broadcast %5 : vector<1x128xf32> to vector<3x128xf32>
    %7 = arith.subf %3, %6 : vector<3x128xf32>
    %8 = math.exp %7 : vector<3x128xf32>
    %cst_2 = arith.constant dense<0.000000e+00> : vector<128xf32>
    %9 = vector.multi_reduction <add>, %8, %cst_2 [0] : vector<3x128xf32> to vector<128xf32>
    %10 = vector.shape_cast %9 : vector<128xf32> to vector<1x128xf32>
    %11 = math.log %10 : vector<1x128xf32>
    %cst_3 = arith.constant dense<0.000000e+00> : vector<128xf32>
    %12 = vector.multi_reduction <add>, %3, %cst_3 [0] : vector<3x128xf32> to vector<128xf32>
    %13 = vector.shape_cast %12 : vector<128xf32> to vector<1x128xf32>
    %14 = tpu.iota {dimensions = array<i32: 0>} : vector<3x128xi32>
    %c0_4 = arith.constant 0 : index
    %c0_5 = arith.constant 0 : index
    %15 = vector.load %arg3[%c0_4, %c0_5] : memref<1x128xi32, #tpu.memory_space<vmem>>, vector<1x128xi32>
    %16 = vector.broadcast %15 : vector<1x128xi32> to vector<3x128xi32>
    %17 = arith.cmpi eq, %14, %16 : vector<3x128xi32>
    %cst_6 = arith.constant 0.000000e+00 : f32
    %18 = vector.broadcast %cst_6 : f32 to vector<3x128xf32>
    %19 = arith.select %17, %3, %18 : vector<3x128xi1>, vector<3x128xf32>
    %cst_7 = arith.constant dense<0.000000e+00> : vector<128xf32>
    %20 = vector.multi_reduction <add>, %19, %cst_7 [0] : vector<3x128xf32> to vector<128xf32>
    %21 = vector.shape_cast %20 : vector<128xf32> to vector<1x128xf32>
    %22 = arith.addf %5, %11 : vector<1x128xf32>
    %cst_8 = arith.constant 2.500000e-02 : f32
    %23 = vector.broadcast %cst_8 : f32 to vector<1x128xf32>
    %24 = arith.mulf %23, %13 : vector<1x128xf32>
    %cst_9 = arith.constant 9.250000e-01 : f32
    %25 = vector.broadcast %cst_9 : f32 to vector<1x128xf32>
    %26 = arith.mulf %25, %21 : vector<1x128xf32>
    %27 = arith.addf %24, %26 : vector<1x128xf32>
    %28 = arith.subf %22, %27 : vector<1x128xf32>
    %c1_i32 = arith.constant 1 : i32
    %29 = arith.muli %arg0, %c1_i32 : i32
    %30 = arith.addi %29, %arg1 : i32
    %c128_i32 = arith.constant 128 : i32
    %31 = arith.muli %30, %c128_i32 : i32
    %32 = tpu.iota {dimensions = array<i32: 1>} : vector<1x128xi32>
    %33 = vector.broadcast %31 : i32 to vector<1x128xi32>
    %34 = arith.addi %33, %32 : vector<1x128xi32>
    %c10_i32 = arith.constant 10 : i32
    %35 = vector.broadcast %c10_i32 : i32 to vector<1x128xi32>
    %36 = arith.cmpi slt, %34, %35 : vector<1x128xi32>
    %cst_10 = arith.constant 0.000000e+00 : f32
    %37 = vector.broadcast %cst_10 : f32 to vector<1x128xf32>
    %38 = arith.select %36, %28, %37 : vector<1x128xi1>, vector<1x128xf32>
    %c0_11 = arith.constant 0 : index
    %c0_12 = arith.constant 0 : index
    %c0_13 = arith.constant 0 : index
    %39 = vector.load %arg4[%c0_11, %c0_12, %c0_13] : memref<1x8x128xf32, #tpu.memory_space<vmem>>, vector<1x8x128xf32>
    %40 = vector.shape_cast %38 : vector<1x128xf32> to vector<1x1x128xf32>
    %cst_14 = arith.constant dense<0.000000e+00> : vector<1xf32>
    %41 = vector.multi_reduction <add>, %40, %cst_14 [1, 2] : vector<1x1x128xf32> to vector<1xf32>
    %42 = vector.shape_cast %41 : vector<1xf32> to vector<1x1x1xf32>
    %43 = vector.extract %42[0, 0, 0] : f32 from vector<1x1x1xf32>
    %44 = vector.broadcast %43 : f32 to vector<1x8x128xf32>
    %45 = arith.addf %39, %44 : vector<1x8x128xf32>
    %c0_15 = arith.constant 0 : index
    %c0_16 = arith.constant 0 : index
    %c0_17 = arith.constant 0 : index
    %46 = vector.load %arg4[%c0_15, %c0_16, %c0_17] : memref<1x8x128xf32, #tpu.memory_space<vmem>>, vector<1x8x128xf32>
    tpu.vector_store %arg4[%c0_15, %c0_16, %c0_17], %45 {strides = array<i32>} : memref<1x8x128xf32, #tpu.memory_space<vmem>>, vector<1x8x128xf32>,
    return
  }
  func.func @transform_0(%arg0: i32, %arg1: i32) -> (i32, i32) {
    %c1_i32 = arith.constant 1 : i32
    %0 = arith.muli %arg0, %c1_i32 : i32
    %1 = arith.addi %0, %arg1 : i32
    %c0_i32 = arith.constant 0 : i32
    %2 = arith.minsi %1, %c0_i32 : i32
    %c0_i32_0 = arith.constant 0 : i32
    %c0_i32_1 = arith.constant 0 : i32
    return %c0_i32_0, %2 : i32, i32
  }
  func.func @transform_1(%arg0: i32, %arg1: i32) -> (i32, i32) {
    %c1_i32 = arith.constant 1 : i32
    %0 = arith.muli %arg0, %c1_i32 : i32
    %1 = arith.addi %0, %arg1 : i32
    %c0_i32 = arith.constant 0 : i32
    %2 = arith.minsi %1, %c0_i32 : i32
    %c0_i32_0 = arith.constant 0 : i32
    %c0_i32_1 = arith.constant 0 : i32
    return %c0_i32_0, %2 : i32, i32
  }
  func.func @transform_2(%arg0: i32, %arg1: i32) -> (i32, i32, i32) {
    %c0_i32 = arith.constant 0 : i32
    %c0_i32_0 = arith.constant 0 : i32
    %c0_i32_1 = arith.constant 0 : i32
    return %arg0, %c0_i32, %c0_i32_0 : i32, i32, i32
  }
}

</mosaic_0001>

<llo_original>
// kernel: tpu_custom_call.1
$region0: #{tpu_custom_call.1}
  #allocation0 [shape = 'u32[]', space=smem, size = 0x4, offset = 0x4, fixed_abs, tag = 'smem constant byte address 0x4 - core index']
  #allocation1 [shape = 'u32[144,128]{1,0:T(1,128)}', space=vmem, size = 0x12000, scoped, tag = 'internal scratch']
  %s0 = inlined_call_operand.hbm [shape: f32[3,10], index: 0, kind: input, shape index: {}]
  %s1 = inlined_call_operand.vmem [shape: s32[1,128], index: 1, kind: input, shape index: {}]
  %s2 = inlined_call_operand.hbm [shape: f32[1,8,128], index: 2, kind: output, shape index: {}]
  %s3 = sld [smem:[#allocation0]]
  $region26: #{tpu_custom_call.1} parent=0
    _
  %s5 = ssub.s32 1, %s3
  %s6 = scalar_select 0, %s5, %s3
  $region1: #{tpu_custom_call.1} parent=0
    #allocation2 [shape = 'u8[2048]{0}', space=vmem, size = 0x800, scoped, tag = 'input window, operand 0, single buffered']
    #allocation3 [shape = 's32[1]{0}', space=sflag, size = 0x4, scoped, tag = 'scoped memory for tpu_custom_call.1']
    #allocation4 [shape = 's32[1]{0}', space=sflag, size = 0x4, scoped, tag = 'scoped memory for tpu_custom_call.1']
    #allocation5 [shape = 'u8[4096]{0}', space=vmem, size = 0x1000, scoped, tag = 'output window, operand 0, single buffered']
    %7 = vsyncpa [#allocation3], 0
    %8 = vsyncpa [#allocation4], 0
    // Predicated region
    $region2: #{tpu_custom_call.1} parent=1 // pred_check
      _
    $region3: #{tpu_custom_call.1} parent=1 // pred_check_branch
      %10 = sbr.rel (0) target = $region5
    $region4: #{tpu_custom_call.1} parent=1 // pred_region
      %s11 = sadd.s32 0, 0
      %p12 = scmp.lt.s32.totalorder %s11, 0
      %s13 = scalar_select %p12, %s11, 0
      %s15 = ssub.s32 64, 64
      %16 = vsyncadd [#allocation3], %s15
      %s17 = smul.addr %s13, 64
      %s18 = scalar_lea.hbm %s0, %s17
      %s20 = sshll.u32 [#allocation2], 4
      %s21 = int_to_ptr.vmem [resolvable:$true] %s20
      %23 = dma.hbm_to_vmem [thread:$0]  %s18, 64, %s21, [#allocation3]
    $region5: #{tpu_custom_call.1} parent=1 // pred_fallthru
      _
    // Predicated region
    $region6: #{tpu_custom_call.1} parent=1 // pred_check
      _
    $region7: #{tpu_custom_call.1} parent=1 // pred_check_branch
      %25 = sbr.rel (0) target = $region9
    $region8: #{tpu_custom_call.1} parent=1 // pred_region
      %s26 = sadd.s32 0, 0
      %p27 = scmp.lt.s32.totalorder %s26, 0
      %s28 = scalar_select %p27, %s26, 0
      %p29 = scmp.lt.s32.totalorder %s28, 0
      %s30 = scalar_select %p29, %s28, 0
      %s31 = scalar_lea.vmem %s1, %s30
      %s32 = sadd.s32 0, 0
      %p33 = scmp.lt.s32.totalorder %s32, 0
      %s34 = scalar_select %p33, %s32, 0
    $region9: #{tpu_custom_call.1} parent=1 // pred_fallthru
      _
    // Predicated region
    $region10: #{tpu_custom_call.1} parent=1 // pred_check
      _
    $region11: #{tpu_custom_call.1} parent=1 // pred_check_branch
      %36 = sbr.rel (0) target = $region13
    $region12: #{tpu_custom_call.1} parent=1 // pred_region
      %37 = dma.done [#allocation3], 64
    $region13: #{tpu_custom_call.1} parent=1 // pred_fallthru
      _
    %s38 = sadd.s32 0, 0
    %p39 = scmp.lt.s32.totalorder %s38, 0
    %s40 = scalar_select %p39, %s38, 0
    %p41 = scmp.lt.s32.totalorder %s40, 0
    %s42 = scalar_select %p41, %s40, 0
    %s43 = scalar_lea.vmem %s1, %s42
    %s44 = sadd.s32 0, 0
    %p45 = scmp.lt.s32.totalorder %s44, 0
    %s46 = scalar_select %p45, %s44, 0
    %s47 = sadd.s32 0, 0
    %p48 = scmp.lt.s32.totalorder %s47, 0
    %s49 = scalar_select %p48, %s47, 0
    %p50 = scmp.lt.s32.totalorder %s49, 0
    %s51 = scalar_select %p50, %s49, 0
    %s52 = scalar_lea.vmem %s1, %s51
    %s53 = sadd.s32 0, 0
    %p54 = scmp.lt.s32.totalorder %s53, 0
    %s55 = scalar_select %p54, %s53, 0
    %p56 = scmp.eq.s32.totalorder 0, 0
    // Predicated region
    $region14: #{tpu_custom_call.1} parent=1 // pred_check
      %p57 = pneg %p56
    $region15: #{tpu_custom_call.1} parent=1 // pred_check_branch
      %59 = sbr.rel (%p57) target = $region17
    $region16: #{tpu_custom_call.1} parent=1 // pred_region
      %60 = vst [vmem:[#allocation5] sm:$0xff] 0.0
    $region17: #{tpu_custom_call.1} parent=1 // pred_fallthru
      _
    %v61 = vld [vmem:[#allocation2] sm:$0x7]
    %vm62 = vcmask 1042432
    %v63 = vsel %vm62, %v61, -inf
    %v64 = vrot.slane %v63, 4
    %v65 = vmax.f32 %v63, %v64
    %v66 = vrot.slane %v65, 2
    %v67 = vmax.f32 %v65, %v66
    %v68 = vrot.slane %v67, 1
    %v69 = vmax.f32 %v67, %v68
    %v70 = vsub.f32 %v61, %v69
    %v71 = vmul.f32 %v70, 1.442695
    %v72 = vpow.pop %v71
    %v73 = vsel %vm62, %v72, 0.0
    %v74 = vrot.slane %v73, 4
    %v75 = vadd.f32 %v73, %v74
    %v76 = vrot.slane %v75, 2
    %v77 = vadd.f32 %v75, %v76
    %v78 = vrot.slane %v77, 1
    %v79 = vadd.f32 %v77, %v78
    %v80 = vlog2.pop %v79
    %v81 = vmul.f32 %v80, 0.6931472
    %v82 = vsel %vm62, %v61, 0.0
    %v83 = vrot.slane %v82, 4
    %v84 = vadd.f32 %v82, %v83
    %v85 = vrot.slane %v84, 2
    %v86 = vadd.f32 %v84, %v85
    %v87 = vrot.slane %v86, 1
    %v88 = vadd.f32 %v86, %v87
    %v89 = vlaneseq
    %v90 = vshrl.u32 %v89, 7
    %v91 = vld [vmem:[%s52] sm:$0x1]
    %v92 = vlaneseq
    %v93 = vshrl.u32 %v92, 7
    %v94 = vsub.s32 0, %v93
    %v95 = vrot.slane %v91, %v94
    %vm96 = vcmp.eq.s32.totalorder %v90, %v95
    %v97 = vsel %vm96, %v61, 0.0
    %v98 = vsel %vm62, %v97, 0.0
    %v99 = vrot.slane %v98, 4
    %v100 = vadd.f32 %v98, %v99
    %v101 = vrot.slane %v100, 2
    %v102 = vadd.f32 %v100, %v101
    %v103 = vrot.slane %v102, 1
    %v104 = vadd.f32 %v102, %v103
    %v105 = vadd.f32 %v69, %v81
    %v106 = vmul.f32 %v88, 0.025
    %v107 = vmul.f32 %v104, 0.925
    %v108 = vadd.f32 %v106, %v107
    %v109 = vsub.f32 %v105, %v108
    %s110 = sadd.s32 0, 0
    %s111 = smul.u32 %s110, 128
    %v112 = vlaneseq
    %v113 = vand.u32 %v112, 127
    %v114 = vstv %s111
    %v115 = vadd.s32 %v114, %v113
    %vm116 = vcmp.lt.s32.totalorder %v115, 10
    %v117 = vsel %vm116, %v109, 0.0
    %v118 = vld [vmem:[#allocation5] sm:$0xff]
    %vm119 = vcmask 1040384
    %v120 = vsel %vm119, %v117, 0.0
    %121 = vadd.xlane.f32.xlu0 %v120
    %v122 = vpop.xlane.xlu0 %121
    %v123 = vrot.slane %v122, 4
    %v124 = vadd.f32 %v122, %v123
    %v125 = vrot.slane %v124, 2
    %v126 = vadd.f32 %v124, %v125
    %v127 = vrot.slane %v126, 1
    %v128 = vadd.f32 %v126, %v127
    %s129 = vtos %v128
    %v130 = vstv %s129
    %v131 = vadd.f32 %v118, %v130
    %132 = vst [vmem:[#allocation5] sm:$0xff] %v131
    // Predicated region
    $region18: #{tpu_custom_call.1} parent=1 // pred_check
      _
    $region19: #{tpu_custom_call.1} parent=1 // pred_check_branch
      %134 = sbr.rel (0) target = $region21
    $region20: #{tpu_custom_call.1} parent=1 // pred_region
      %s136 = ssub.s32 128, 128
      %137 = vsyncadd [#allocation4], %s136
      %s139 = sshll.u32 [#allocation5], 4
      %s140 = int_to_ptr.vmem [resolvable:$true] %s139
      %142 = dma.vmem_to_hbm [thread:$0]  %s140, 128, %s2, [#allocation4]
    $region21: #{tpu_custom_call.1} parent=1 // pred_fallthru
      _
    // Predicated region
    $region22: #{tpu_custom_call.1} parent=1 // pred_check
      _
    $region23: #{tpu_custom_call.1} parent=1 // pred_check_branch
      %144 = sbr.rel (0) target = $region25
    $region24: #{tpu_custom_call.1} parent=1 // pred_region
      %145 = dma.done [#allocation4], 128
    $region25: #{tpu_custom_call.1} parent=1 // pred_fallthru
      _
    %146 = vsyncpa [#allocation3], 1
    %147 = vsyncpa [#allocation4], 1

</llo_original>
